<compile_context>
chip_gen: v6e
topology: v6e:2x2x1
jax: 0.10.0
libtpu: 0.0.40
codegen_flags: <defaults>
</compile_context>

<pallas_src>
import jax
import jax.numpy as jnp
from jax.experimental import pallas as pl
from jax.experimental.pallas import tpu as pltpu


def _round_up(n, m):
    return ((n + m - 1) // m) * m


def _cdiv(a, b):
    return -(-a // b)


def _vmem_capacity_bytes():
    """Physical VMEM per TensorCore (128 MiB v5e/v6e, 64 MiB v7x)."""
    try:
        cap = getattr(pltpu.get_tpu_info(), "vmem_capacity_bytes", None)
        if cap:
            return int(cap)
    except Exception:
        pass
    return 64 * 1024 * 1024  # conservative fallback (v7x-sized)


def _pick_lane_width(total, freq):
    # Lane-dense re-flattening when it is a free bitcast reshape; this turns
    # per-row strided DMAs (freq like 257/513/1025) into contiguous transfers.
    for lane in (512, 256, 128):
        if total % lane == 0 and total // lane >= 8:
            return lane
    return freq  # natural layout; last block dim == full array dim (exempt)


def log_stft_magnitude_loss(x_mag, y_mag):
    """Pallas equivalent of nn.functional.l1_loss(log(y_mag), log(x_mag))."""
    assert x_mag.shape == y_mag.shape
    total = x_mag.size
    freq = x_mag.shape[-1]
    itemsize = max(jnp.dtype(x_mag.dtype).itemsize, jnp.dtype(y_mag.dtype).itemsize)

    lane = _pick_lane_width(total, freq)
    rows = total // lane
    x2 = x_mag.reshape(rows, lane)
    y2 = y_mag.reshape(rows, lane)

    # -------- per-generation VMEM budget & tile sizing -------------------
    vmem_cap = _vmem_capacity_bytes()
    # ~62% of physical VMEM for the 2 inputs x 2 pipeline buffers.
    input_budget = max(16 << 20, min(int(vmem_cap * 0.625), vmem_cap - (24 << 20)))

    if rows < 8:
        tile_rows = rows  # whole array is a single (full-dim) block
    else:
        row_align = 16 if rows >= 16 else 8  # 16 also keeps bf16 packing happy
        per_buffer = input_budget // 4       # 2 inputs x double buffering
        budget_rows = max(row_align,
                          (per_buffer // (lane * itemsize)) // row_align * row_align)
        # aim for >=2 row blocks so the 2-TC split has work on v7x
        target_rows = _round_up(max(1, _cdiv(rows, 2)), row_align)
        tile_rows = min(budget_rows, target_rows, _round_up(rows, row_align))

    num_blocks = _cdiv(rows, tile_rows)
    num_cores = 2 if num_blocks >= 2 else 1   # serial loop on 1-TC chips, split on v7x
    bpc = _cdiv(num_blocks, num_cores)        # row blocks per core

    if tile_rows >= 16 and tile_rows % 16 == 0:
        group = 16
    elif tile_rows % 8 == 0:
        group = 8
    else:
        group = tile_rows                      # tiny whole-array case
    groups_per_block = tile_rows // group

    io_bytes = 2 * 2 * tile_rows * lane * itemsize
    out_bytes = 2 * num_cores * group * lane * 4
    vmem_limit = int(min(max(io_bytes + out_bytes + (8 << 20), 32 << 20),
                         vmem_cap - (8 << 20)))

    # -------- index maps ---------------------------------------------------
    def in_idx(c, i):
        start = c * bpc
        end = jnp.minimum(start + bpc, num_blocks)
        # Clamp to the core-local last valid block: an out-of-range tail step
        # re-uses the previous step's block (DMA elided) and its rows are fully
        # masked inside the kernel (unclamped row0 >= rows).
        return (jnp.minimum(start + i, end - 1), 0)

    # -------- kernel --------------------------------------------------------
    def kernel(x_ref, y_ref, out_ref):
        c = pl.program_id(0)
        i = pl.program_id(1)

        @pl.when(i == 0)
        def _init():
            out_ref[...] = jnp.zeros_like(out_ref)

        row0 = (c * bpc + i) * tile_rows  # unclamped global first row of block

        def tile_diff(x, y, base_row, masked):
            x = x.astype(jnp.float32)
            y = y.astype(jnp.float32)
            d = jnp.abs(jnp.log(y) - jnp.log(x))
            if masked:
                nrows = d.shape[0]
                sub = jax.lax.broadcasted_iota(jnp.int32, (nrows, 1), 0)
                # select discards NaN/Inf coming from log() of pad garbage
                d = jnp.where(base_row + sub < rows, d, 0.0)
            return d

        def accumulate(masked):
            if groups_per_block == 1:
                out_ref[...] += tile_diff(x_ref[...], y_ref[...], row0, masked)[None]
            else:
                def body(g, acc):
                    r = pl.multiple_of(g * group, group)
                    return acc + tile_diff(x_ref[pl.ds(r, group), :],
                                           y_ref[pl.ds(r, group), :],
                                           row0 + r, masked)
                tot = jax.lax.fori_loop(0, groups_per_block, body,
                                        jnp.zeros((group, lane), jnp.float32))
                out_ref[...] += tot[None]

        fully_valid = row0 + tile_rows <= rows

        @pl.when(fully_valid)          # steady state: no masking at all
        def _steady():
            accumulate(masked=False)

        @pl.when(jnp.logical_not(fully_valid))   # ragged / clamped tail blocks
        def _ragged():
            accumulate(masked=True)

    cost = pl.CostEstimate(
        flops=3 * total,
        transcendentals=2 * total,
        bytes_accessed=total * (jnp.dtype(x_mag.dtype).itemsize
                                + jnp.dtype(y_mag.dtype).itemsize)
        + num_cores * group * lane * 4,
    )

    partials = pl.pallas_call(
        kernel,
        out_shape=jax.ShapeDtypeStruct((num_cores, group, lane), jnp.float32),
        grid_spec=pltpu.PrefetchScalarGridSpec(
            num_scalar_prefetch=0,
            grid=(num_cores, bpc),
            in_specs=[
                pl.BlockSpec((tile_rows, lane), in_idx),
                pl.BlockSpec((tile_rows, lane), in_idx),
            ],
            out_specs=pl.BlockSpec((1, group, lane), lambda c, i: (c, 0, 0)),
        ),
        compiler_params=pltpu.CompilerParams(
            dimension_semantics=("parallel", "arbitrary"),
            vmem_limit_bytes=vmem_limit,
        ),
        cost_estimate=cost,
    )(x2, y2)

    # Tiny epilogue reduction (num_cores*group*lane elements) + mean in XLA.
    return jnp.sum(partials) / jnp.float32(total)


if __name__ == "__main__":
    key = jax.random.PRNGKey(0)
    kx, ky = jax.random.split(key)

    # Small STFT-magnitude-like inputs: (batch=2, frames=16, freq_bins=128).
    # Magnitudes must be strictly positive for log().
    x_mag = jax.random.uniform(kx, (2, 16, 128), jnp.float32, minval=0.1, maxval=4.0)
    y_mag = jax.random.uniform(ky, (2, 16, 128), jnp.float32, minval=0.1, maxval=4.0)

    loss = log_stft_magnitude_loss(x_mag, y_mag)
    loss = jax.block_until_ready(loss)

    # Reference check (plain JAX) to validate semantics.
    ref = jnp.mean(jnp.abs(jnp.log(y_mag) - jnp.log(x_mag)))
    assert jnp.allclose(loss, ref, rtol=1e-5, atol=1e-6), (loss, ref)

    print("KERNEL_OK")
</pallas_src>

<mosaic_0001>
module attributes {stable_mosaic.version = 11 : i64} {
  func.func @kernel(%arg0: i32, %arg1: i32, %arg2: memref<8x512xf32, #tpu.memory_space<vmem>>, %arg3: memref<8x512xf32, #tpu.memory_space<vmem>>, %arg4: memref<1x8x512xf32, #tpu.memory_space<vmem>>) attributes {dimension_semantics = [#tpu.dimension_semantics<parallel>, #tpu.dimension_semantics<arbitrary>], iteration_bounds = array<i64: 1, 1>, scalar_prefetch = 0 : i64, scratch_operands = 0 : i64, tpu.core_type = #tpu.core_type<tc>, window_params = [{transform_indices = @transform_0, window_bounds = array<i64: 8, 512>}, {transform_indices = @transform_1, window_bounds = array<i64: 8, 512>}, {transform_indices = @transform_2, window_bounds = array<i64: 1, 8, 512>}]} {
    %c0_i32 = arith.constant 0 : i32
    %0 = arith.cmpi eq, %arg1, %c0_i32 : i32
    %1 = arith.extui %0 : i1 to i32
    %c0_i32_0 = arith.constant 0 : i32
    %2 = arith.cmpi ne, %1, %c0_i32_0 : i32
    scf.if %2 {
      %cst = arith.constant 0.000000e+00 : f32
      %13 = vector.broadcast %cst : f32 to vector<1x8x512xf32>
      %c0 = arith.constant 0 : index
      %c0_5 = arith.constant 0 : index
      %c0_6 = arith.constant 0 : index
      %14 = vector.load %arg4[%c0, %c0_5, %c0_6] : memref<1x8x512xf32, #tpu.memory_space<vmem>>, vector<1x8x512xf32>
      tpu.vector_store %arg4[%c0, %c0_5, %c0_6], %13 {strides = array<i32>} : memref<1x8x512xf32, #tpu.memory_space<vmem>>, vector<1x8x512xf32>,
    } else {
    }
    %c1_i32 = arith.constant 1 : i32
    %3 = arith.muli %arg0, %c1_i32 : i32
    %4 = arith.addi %3, %arg1 : i32
    %c8_i32 = arith.constant 8 : i32
    %5 = arith.muli %4, %c8_i32 : i32
    %c8_i32_1 = arith.constant 8 : i32
    %6 = arith.addi %5, %c8_i32_1 : i32
    %c8_i32_2 = arith.constant 8 : i32
    %7 = arith.cmpi sle, %6, %c8_i32_2 : i32
    %8 = arith.extui %7 : i1 to i32
    %c0_i32_3 = arith.constant 0 : i32
    %9 = arith.cmpi ne, %8, %c0_i32_3 : i32
    scf.if %9 {
      %c0 = arith.constant 0 : index
      %c0_5 = arith.constant 0 : index
      %c0_6 = arith.constant 0 : index
      %13 = vector.load %arg4[%c0, %c0_5, %c0_6] : memref<1x8x512xf32, #tpu.memory_space<vmem>>, vector<1x8x512xf32>
      %c0_7 = arith.constant 0 : index
      %c0_8 = arith.constant 0 : index
      %14 = vector.load %arg2[%c0_7, %c0_8] : memref<8x512xf32, #tpu.memory_space<vmem>>, vector<8x512xf32>
      %c0_9 = arith.constant 0 : index
      %c0_10 = arith.constant 0 : index
      %15 = vector.load %arg3[%c0_9, %c0_10] : memref<8x512xf32, #tpu.memory_space<vmem>>, vector<8x512xf32>
      %16 = math.log %15 : vector<8x512xf32>
      %17 = math.log %14 : vector<8x512xf32>
      %18 = arith.subf %16, %17 : vector<8x512xf32>
      %19 = math.absf %18 : vector<8x512xf32>
      %20 = vector.shape_cast %19 : vector<8x512xf32> to vector<1x8x512xf32>
      %21 = arith.addf %13, %20 : vector<1x8x512xf32>
      %c0_11 = arith.constant 0 : index
      %c0_12 = arith.constant 0 : index
      %c0_13 = arith.constant 0 : index
      %22 = vector.load %arg4[%c0_11, %c0_12, %c0_13] : memref<1x8x512xf32, #tpu.memory_space<vmem>>, vector<1x8x512xf32>
      tpu.vector_store %arg4[%c0_11, %c0_12, %c0_13], %21 {strides = array<i32>} : memref<1x8x512xf32, #tpu.memory_space<vmem>>, vector<1x8x512xf32>,
    } else {
    }
    %true = arith.constant true
    %10 = arith.xori %7, %true : i1
    %11 = arith.extui %10 : i1 to i32
    %c0_i32_4 = arith.constant 0 : i32
    %12 = arith.cmpi ne, %11, %c0_i32_4 : i32
    scf.if %12 {
      %c0 = arith.constant 0 : index
      %c0_5 = arith.constant 0 : index
      %c0_6 = arith.constant 0 : index
      %13 = vector.load %arg4[%c0, %c0_5, %c0_6] : memref<1x8x512xf32, #tpu.memory_space<vmem>>, vector<1x8x512xf32>
      %c0_7 = arith.constant 0 : index
      %c0_8 = arith.constant 0 : index
      %14 = vector.load %arg2[%c0_7, %c0_8] : memref<8x512xf32, #tpu.memory_space<vmem>>, vector<8x512xf32>
      %c0_9 = arith.constant 0 : index
      %c0_10 = arith.constant 0 : index
      %15 = vector.load %arg3[%c0_9, %c0_10] : memref<8x512xf32, #tpu.memory_space<vmem>>, vector<8x512xf32>
      %16 = math.log %15 : vector<8x512xf32>
      %17 = math.log %14 : vector<8x512xf32>
      %18 = arith.subf %16, %17 : vector<8x512xf32>
      %19 = math.absf %18 : vector<8x512xf32>
      %20 = tpu.iota {dimensions = array<i32: 0>} : vector<8x1xi32>
      %21 = vector.broadcast %5 : i32 to vector<8x1xi32>
      %22 = arith.addi %21, %20 : vector<8x1xi32>
      %c8_i32_11 = arith.constant 8 : i32
      %23 = vector.broadcast %c8_i32_11 : i32 to vector<8x1xi32>
      %24 = arith.cmpi slt, %22, %23 : vector<8x1xi32>
      %cst = arith.constant 0.000000e+00 : f32
      %25 = vector.shape_cast %24 : vector<8x1xi1> to vector<8x1xi1>
      %26 = vector.broadcast %25 : vector<8x1xi1> to vector<8x512xi1>
      %27 = vector.broadcast %cst : f32 to vector<8x512xf32>
      %28 = arith.select %26, %19, %27 : vector<8x512xi1>, vector<8x512xf32>
      %29 = vector.shape_cast %28 : vector<8x512xf32> to vector<1x8x512xf32>
      %30 = arith.addf %13, %29 : vector<1x8x512xf32>
      %c0_12 = arith.constant 0 : index
      %c0_13 = arith.constant 0 : index
      %c0_14 = arith.constant 0 : index
      %31 = vector.load %arg4[%c0_12, %c0_13, %c0_14] : memref<1x8x512xf32, #tpu.memory_space<vmem>>, vector<1x8x512xf32>
      tpu.vector_store %arg4[%c0_12, %c0_13, %c0_14], %30 {strides = array<i32>} : memref<1x8x512xf32, #tpu.memory_space<vmem>>, vector<1x8x512xf32>,
    } else {
    }
    return
  }
  func.func @transform_0(%arg0: i32, %arg1: i32) -> (i32, i32) {
    %c1_i32 = arith.constant 1 : i32
    %0 = arith.muli %arg0, %c1_i32 : i32
    %c1_i32_0 = arith.constant 1 : i32
    %1 = arith.addi %0, %c1_i32_0 : i32
    %c1_i32_1 = arith.constant 1 : i32
    %2 = arith.minsi %1, %c1_i32_1 : i32
    %3 = arith.addi %0, %arg1 : i32
    %c1_i32_2 = arith.constant 1 : i32
    %4 = arith.subi %2, %c1_i32_2 : i32
    %5 = arith.minsi %3, %4 : i32
    %c0_i32 = arith.constant 0 : i32
    %c0_i32_3 = arith.constant 0 : i32
    return %5, %c0_i32 : i32, i32
  }
  func.func @transform_1(%arg0: i32, %arg1: i32) -> (i32, i32) {
    %c1_i32 = arith.constant 1 : i32
    %0 = arith.muli %arg0, %c1_i32 : i32
    %c1_i32_0 = arith.constant 1 : i32
    %1 = arith.addi %0, %c1_i32_0 : i32
    %c1_i32_1 = arith.constant 1 : i32
    %2 = arith.minsi %1, %c1_i32_1 : i32
    %3 = arith.addi %0, %arg1 : i32
    %c1_i32_2 = arith.constant 1 : i32
    %4 = arith.subi %2, %c1_i32_2 : i32
    %5 = arith.minsi %3, %4 : i32
    %c0_i32 = arith.constant 0 : i32
    %c0_i32_3 = arith.constant 0 : i32
    return %5, %c0_i32 : i32, i32
  }
  func.func @transform_2(%arg0: i32, %arg1: i32) -> (i32, i32, i32) {
    %c0_i32 = arith.constant 0 : i32
    %c0_i32_0 = arith.constant 0 : i32
    %c0_i32_1 = arith.constant 0 : i32
    return %arg0, %c0_i32, %c0_i32_0 : i32, i32, i32
  }
}

</mosaic_0001>

<llo_original>
// kernel: tpu_custom_call.1
$region0: #{tpu_custom_call.1}
  #allocation0 [shape = 'u32[]', space=smem, size = 0x4, offset = 0x4, fixed_abs, tag = 'smem constant byte address 0x4 - core index']
  #allocation1 [shape = 'u32[144,128]{1,0:T(1,128)}', space=vmem, size = 0x12000, scoped, tag = 'internal scratch']
  %s0 = inlined_call_operand.hbm [shape: f32[8,512], index: 0, kind: input, shape index: {}]
  %s1 = inlined_call_operand.hbm [shape: f32[8,512], index: 1, kind: input, shape index: {}]
  %s2 = inlined_call_operand.hbm [shape: f32[1,8,512], index: 2, kind: output, shape index: {}]
  %s3 = sld [smem:[#allocation0]]
  $region38: #{tpu_custom_call.1} parent=0
    _
  %s5 = ssub.s32 1, %s3
  %s6 = scalar_select 0, %s5, %s3
  $region1: #{tpu_custom_call.1} parent=0
    #allocation2 [shape = 'u8[16384]{0}', space=vmem, size = 0x4000, scoped, tag = 'input window, operand 0, single buffered']
    #allocation3 [shape = 's32[1]{0}', space=sflag, size = 0x4, scoped, tag = 'scoped memory for tpu_custom_call.1']
    #allocation4 [shape = 's32[1]{0}', space=sflag, size = 0x4, scoped, tag = 'scoped memory for tpu_custom_call.1']
    #allocation5 [shape = 'u8[16384]{0}', space=vmem, size = 0x4000, scoped, tag = 'input window, operand 1, single buffered']
    #allocation6 [shape = 's32[1]{0}', space=sflag, size = 0x4, scoped, tag = 'scoped memory for tpu_custom_call.1']
    #allocation7 [shape = 'u8[16384]{0}', space=vmem, size = 0x4000, scoped, tag = 'output window, operand 0, single buffered']
    %7 = vsyncpa [#allocation3], 0
    %8 = vsyncpa [#allocation6], 0
    %9 = vsyncpa [#allocation4], 0
    // Predicated region
    $region2: #{tpu_custom_call.1} parent=1 // pred_check
      _
    $region3: #{tpu_custom_call.1} parent=1 // pred_check_branch
      %11 = sbr.rel (0) target = $region5
    $region4: #{tpu_custom_call.1} parent=1 // pred_region
      %s12 = sadd.s32 0, 1
      %p13 = scmp.lt.s32.totalorder %s12, 1
      %s14 = scalar_select %p13, %s12, 1
      %s15 = sadd.s32 0, 0
      %s16 = ssub.s32 %s14, 1
      %p17 = scmp.lt.s32.totalorder %s15, %s16
      %s18 = scalar_select %p17, %s15, %s16
      %s20 = ssub.s32 512, 512
      %21 = vsyncadd [#allocation3], %s20
      %s22 = smul.addr %s18, 4
      %s23 = smul.addr %s22, 128
      %s24 = scalar_lea.hbm %s0, %s23
      %s26 = sshll.u32 [#allocation2], 4
      %s27 = int_to_ptr.vmem [resolvable:$true] %s26
      %29 = dma.hbm_to_vmem [thread:$0]  %s24, 512, %s27, [#allocation3]
    $region5: #{tpu_custom_call.1} parent=1 // pred_fallthru
      _
    // Predicated region
    $region6: #{tpu_custom_call.1} parent=1 // pred_check
      _
    $region7: #{tpu_custom_call.1} parent=1 // pred_check_branch
      %31 = sbr.rel (0) target = $region9
    $region8: #{tpu_custom_call.1} parent=1 // pred_region
      %s32 = sadd.s32 0, 1
      %p33 = scmp.lt.s32.totalorder %s32, 1
      %s34 = scalar_select %p33, %s32, 1
      %s35 = sadd.s32 0, 0
      %s36 = ssub.s32 %s34, 1
      %p37 = scmp.lt.s32.totalorder %s35, %s36
      %s38 = scalar_select %p37, %s35, %s36
      %s40 = ssub.s32 512, 512
      %41 = vsyncadd [#allocation6], %s40
      %s42 = smul.addr %s38, 4
      %s43 = smul.addr %s42, 128
      %s44 = scalar_lea.hbm %s1, %s43
      %s46 = sshll.u32 [#allocation5], 4
      %s47 = int_to_ptr.vmem [resolvable:$true] %s46
      %49 = dma.hbm_to_vmem [thread:$0]  %s44, 512, %s47, [#allocation6]
    $region9: #{tpu_custom_call.1} parent=1 // pred_fallthru
      _
    // Predicated region
    $region10: #{tpu_custom_call.1} parent=1 // pred_check
      _
    $region11: #{tpu_custom_call.1} parent=1 // pred_check_branch
      %51 = sbr.rel (0) target = $region13
    $region12: #{tpu_custom_call.1} parent=1 // pred_region
      %52 = dma.done [#allocation3], 512
    $region13: #{tpu_custom_call.1} parent=1 // pred_fallthru
      _
    // Predicated region
    $region14: #{tpu_custom_call.1} parent=1 // pred_check
      _
    $region15: #{tpu_custom_call.1} parent=1 // pred_check_branch
      %54 = sbr.rel (0) target = $region17
    $region16: #{tpu_custom_call.1} parent=1 // pred_region
      %55 = dma.done [#allocation6], 512
    $region17: #{tpu_custom_call.1} parent=1 // pred_fallthru
      _
    %s56 = sadd.s32 0, 1
    %p57 = scmp.lt.s32.totalorder %s56, 1
    %s58 = scalar_select %p57, %s56, 1
    %s59 = sadd.s32 0, 0
    %s60 = ssub.s32 %s58, 1
    %p61 = scmp.lt.s32.totalorder %s59, %s60
    %s62 = scalar_select %p61, %s59, %s60
    %s63 = sadd.s32 0, 1
    %p64 = scmp.lt.s32.totalorder %s63, 1
    %s65 = scalar_select %p64, %s63, 1
    %s66 = sadd.s32 0, 0
    %s67 = ssub.s32 %s65, 1
    %p68 = scmp.lt.s32.totalorder %s66, %s67
    %s69 = scalar_select %p68, %s66, %s67
    %p70 = scmp.eq.s32.totalorder 0, 0
    // Predicated region
    $region18: #{tpu_custom_call.1} parent=1 // pred_check
      %p71 = pneg %p70
    $region19: #{tpu_custom_call.1} parent=1 // pred_check_branch
      %73 = sbr.rel (%p71) target = $region21
    $region20: #{tpu_custom_call.1} parent=1 // pred_region
      %74 = vst [vmem:[#allocation7] sm:$0xff] 0.0
      %75 = vst [vmem:[#allocation7 + $0x8] sm:$0xff] 0.0
      %76 = vst [vmem:[#allocation7 + $0x10] sm:$0xff] 0.0
      %77 = vst [vmem:[#allocation7 + $0x18] sm:$0xff] 0.0
    $region21: #{tpu_custom_call.1} parent=1 // pred_fallthru
      _
    %s78 = sadd.s32 0, 0
    %s79 = smul.u32 %s78, 8
    %s80 = sadd.s32 %s79, 8
    %p81 = scmp.le.s32.totalorder %s80, 8
    // Predicated region
    $region22: #{tpu_custom_call.1} parent=1 // pred_check
      %p82 = pneg %p81
    $region23: #{tpu_custom_call.1} parent=1 // pred_check_branch
      %84 = sbr.rel (%p82) target = $region25
    $region24: #{tpu_custom_call.1} parent=1 // pred_region
      %v85 = vld [vmem:[#allocation7] sm:$0xff]
      %v86 = vld [vmem:[#allocation7 + $0x8] sm:$0xff]
      %v87 = vld [vmem:[#allocation7 + $0x10] sm:$0xff]
      %v88 = vld [vmem:[#allocation7 + $0x18] sm:$0xff]
      %v89 = vld [vmem:[#allocation2] sm:$0xff]
      %v90 = vld [vmem:[#allocation2 + $0x8] sm:$0xff]
      %v91 = vld [vmem:[#allocation2 + $0x10] sm:$0xff]
      %v92 = vld [vmem:[#allocation2 + $0x18] sm:$0xff]
      %v93 = vld [vmem:[#allocation5] sm:$0xff]
      %v94 = vld [vmem:[#allocation5 + $0x8] sm:$0xff]
      %v95 = vld [vmem:[#allocation5 + $0x10] sm:$0xff]
      %v96 = vld [vmem:[#allocation5 + $0x18] sm:$0xff]
      %v97 = vlog2.pop %v93
      %v98 = vmul.f32 %v97, 0.6931472
      %v99 = vlog2.pop %v94
      %v100 = vmul.f32 %v99, 0.6931472
      %v101 = vlog2.pop %v95
      %v102 = vmul.f32 %v101, 0.6931472
      %v103 = vlog2.pop %v96
      %v104 = vmul.f32 %v103, 0.6931472
      %v105 = vlog2.pop %v89
      %v106 = vmul.f32 %v105, 0.6931472
      %v107 = vlog2.pop %v90
      %v108 = vmul.f32 %v107, 0.6931472
      %v109 = vlog2.pop %v91
      %v110 = vmul.f32 %v109, 0.6931472
      %v111 = vlog2.pop %v92
      %v112 = vmul.f32 %v111, 0.6931472
      %v113 = vsub.f32 %v98, %v106
      %v114 = vsub.f32 %v100, %v108
      %v115 = vsub.f32 %v102, %v110
      %v116 = vsub.f32 %v104, %v112
      %v117 = vand.u32 2147483647, %v113
      %v118 = vand.u32 2147483647, %v114
      %v119 = vand.u32 2147483647, %v115
      %v120 = vand.u32 2147483647, %v116
      %v121 = vadd.f32 %v85, %v117
      %v122 = vadd.f32 %v86, %v118
      %v123 = vadd.f32 %v87, %v119
      %v124 = vadd.f32 %v88, %v120
      %125 = vst [vmem:[#allocation7] sm:$0xff] %v121
      %126 = vst [vmem:[#allocation7 + $0x8] sm:$0xff] %v122
      %127 = vst [vmem:[#allocation7 + $0x10] sm:$0xff] %v123
      %128 = vst [vmem:[#allocation7 + $0x18] sm:$0xff] %v124
    $region25: #{tpu_custom_call.1} parent=1 // pred_fallthru
      _
    %p129 = scmp.gt.s32.totalorder %s80, 8
    // Predicated region
    $region26: #{tpu_custom_call.1} parent=1 // pred_check
      %p130 = pneg %p129
    $region27: #{tpu_custom_call.1} parent=1 // pred_check_branch
      %132 = sbr.rel (%p130) target = $region29
    $region28: #{tpu_custom_call.1} parent=1 // pred_region
      %v133 = vld [vmem:[#allocation7] sm:$0xff]
      %v134 = vld [vmem:[#allocation7 + $0x8] sm:$0xff]
      %v135 = vld [vmem:[#allocation7 + $0x10] sm:$0xff]
      %v136 = vld [vmem:[#allocation7 + $0x18] sm:$0xff]
      %v137 = vld [vmem:[#allocation2] sm:$0xff]
      %v138 = vld [vmem:[#allocation2 + $0x8] sm:$0xff]
      %v139 = vld [vmem:[#allocation2 + $0x10] sm:$0xff]
      %v140 = vld [vmem:[#allocation2 + $0x18] sm:$0xff]
      %v141 = vld [vmem:[#allocation5] sm:$0xff]
      %v142 = vld [vmem:[#allocation5 + $0x8] sm:$0xff]
      %v143 = vld [vmem:[#allocation5 + $0x10] sm:$0xff]
      %v144 = vld [vmem:[#allocation5 + $0x18] sm:$0xff]
      %v145 = vlog2.pop %v141
      %v146 = vmul.f32 %v145, 0.6931472
      %v147 = vlog2.pop %v142
      %v148 = vmul.f32 %v147, 0.6931472
      %v149 = vlog2.pop %v143
      %v150 = vmul.f32 %v149, 0.6931472
      %v151 = vlog2.pop %v144
      %v152 = vmul.f32 %v151, 0.6931472
      %v153 = vlog2.pop %v137
      %v154 = vmul.f32 %v153, 0.6931472
      %v155 = vlog2.pop %v138
      %v156 = vmul.f32 %v155, 0.6931472
      %v157 = vlog2.pop %v139
      %v158 = vmul.f32 %v157, 0.6931472
      %v159 = vlog2.pop %v140
      %v160 = vmul.f32 %v159, 0.6931472
      %v161 = vsub.f32 %v146, %v154
      %v162 = vsub.f32 %v148, %v156
      %v163 = vsub.f32 %v150, %v158
      %v164 = vsub.f32 %v152, %v160
      %v165 = vand.u32 2147483647, %v161
      %v166 = vand.u32 2147483647, %v162
      %v167 = vand.u32 2147483647, %v163
      %v168 = vand.u32 2147483647, %v164
      %v169 = vlaneseq
      %v170 = vshrl.u32 %v169, 7
      %v171 = vstv %s79
      %v172 = vadd.s32 %v171, %v170
      %vm173 = vcmp.lt.s32.totalorder %v172, 8
      %v174 = vsel %vm173, 1, 0
      %vm175 = vcmp.eq.s32.totalorder %v174, 1
      %v176 = vsel %vm175, %v165, 0.0
      %v177 = vsel %vm175, %v166, 0.0
      %v178 = vsel %vm175, %v167, 0.0
      %v179 = vsel %vm175, %v168, 0.0
      %v180 = vadd.f32 %v133, %v176
      %v181 = vadd.f32 %v134, %v177
      %v182 = vadd.f32 %v135, %v178
      %v183 = vadd.f32 %v136, %v179
      %184 = vst [vmem:[#allocation7] sm:$0xff] %v180
      %185 = vst [vmem:[#allocation7 + $0x8] sm:$0xff] %v181
      %186 = vst [vmem:[#allocation7 + $0x10] sm:$0xff] %v182
      %187 = vst [vmem:[#allocation7 + $0x18] sm:$0xff] %v183
    $region29: #{tpu_custom_call.1} parent=1 // pred_fallthru
      _
    // Predicated region
    $region30: #{tpu_custom_call.1} parent=1 // pred_check
      _
    $region31: #{tpu_custom_call.1} parent=1 // pred_check_branch
      %189 = sbr.rel (0) target = $region33
    $region32: #{tpu_custom_call.1} parent=1 // pred_region
      %s191 = ssub.s32 512, 512
      %192 = vsyncadd [#allocation4], %s191
      %s194 = sshll.u32 [#allocation7], 4
      %s195 = int_to_ptr.vmem [resolvable:$true] %s194
      %197 = dma.vmem_to_hbm [thread:$0]  %s195, 512, %s2, [#allocation4]
    $region33: #{tpu_custom_call.1} parent=1 // pred_fallthru
      _
    // Predicated region
    $region34: #{tpu_custom_call.1} parent=1 // pred_check
      _
    $region35: #{tpu_custom_call.1} parent=1 // pred_check_branch
      %199 = sbr.rel (0) target = $region37
    $region36: #{tpu_custom_call.1} parent=1 // pred_region
      %200 = dma.done [#allocation4], 512
    $region37: #{tpu_custom_call.1} parent=1 // pred_fallthru
      _
    %201 = vsyncpa [#allocation3], 1
    %202 = vsyncpa [#allocation6], 1
    %203 = vsyncpa [#allocation4], 1

</llo_original>
